<compile_context>
chip_gen: v5e
topology: v5e:2x2
jax: 0.10.0
libtpu: 0.0.40
codegen_flags: <defaults>
</compile_context>

<pallas_src>
import functools

import jax
import jax.numpy as jnp
from jax.experimental import pallas as pl
from jax.experimental.pallas import tpu as pltpu


def _round_up(x, m):
    return (x + m - 1) // m * m


# ---------------------------------------------------------------------------
# Hardware introspection (generation-aware VMEM budget / TensorCore count)
# ---------------------------------------------------------------------------
@functools.lru_cache(maxsize=1)
def _tpu_generation():
    """Return (vmem_capacity_bytes_per_core, num_tensorcores_per_chip)."""
    kind = ""
    try:
        kind = jax.devices()[0].device_kind.lower()
    except Exception:
        pass
    cap = 0
    cores = None
    try:
        info = pltpu.get_tpu_info()
        cap = int(getattr(info, "vmem_capacity_bytes", 0) or 0)
        for name in ("num_tensorcores", "tensorcore_count", "num_cores",
                     "core_count"):
            v = getattr(info, name, None)
            if v:
                cores = int(v)
                break
    except Exception:
        pass
    is_v7 = ("v7" in kind) or ("tpu7" in kind) or (0 < cap <= (64 << 20))
    if cap <= 0:
        cap = (64 << 20) if is_v7 else (128 << 20)
    if cores is None:
        cores = 2 if is_v7 else 1
    return cap, cores


def _vmem_hard_cap():
    cap, _ = _tpu_generation()
    if cap <= (64 << 20):
        return 52 << 20        # v7x: 64 MiB physical per TC -> leave headroom
    return 100 << 20           # v5e/v6e: 128 MiB physical


def _vmem_budget():
    return _vmem_hard_cap() - (8 << 20)


def _vmem_limit(nbytes):
    # nbytes is an over-estimate (weights counted double-buffered) so the
    # scoped limit always covers the real allocation even on the fallback path.
    return int(min(_vmem_hard_cap(), max(32 << 20, nbytes * 5 // 4 + (4 << 20))))


# ---------------------------------------------------------------------------
# Kernel 1: input projection  xproj = x @ W_ih^T + (b_ih + b_hh)
# One big GEMM per grid step over a (Tc*Bb, Inp) tile; fully parallel grid.
# ---------------------------------------------------------------------------
def _input_proj_kernel(x_ref, wih_ref, b_ref, out_ref):
    tc, bb, inp = x_ref.shape
    g4 = out_ref.shape[-1]
    x2d = x_ref[...].reshape(tc * bb, inp).astype(wih_ref.dtype)
    gates = jnp.dot(x2d, wih_ref[...], preferred_element_type=jnp.float32)
    gates = gates + b_ref[...]
    out_ref[...] = gates.reshape(tc, bb, g4).astype(out_ref.dtype)


# ---------------------------------------------------------------------------
# Kernel 2: recurrence. grid = (batch_blocks, time_chunks); the time loop lives
# inside the kernel (pl.loop); h/c are carried across chunks in VMEM scratch.
# Gate order in the prepared weights is (i, f, o, g): one contiguous sigmoid
# slab + one tanh slab.  h scratch is kept in the matmul dtype (bf16 shadow).
# ---------------------------------------------------------------------------
def _lstm_recurrent_kernel(xproj_ref, whh_ref, out_ref, h_sc, c_sc):
    hp = c_sc.shape[-1]
    tc = xproj_ref.shape[0]

    @pl.when(pl.program_id(1) == 0)   # first time chunk of this batch block
    def _():
        # hidden=None in RNNCore.forward -> zero initial states (_one_hidden)
        h_sc[...] = jnp.zeros_like(h_sc)
        c_sc[...] = jnp.zeros_like(c_sc)

    @pl.loop(0, tc)
    def _(t):
        gates = xproj_ref[t].astype(jnp.float32) + jnp.dot(
            h_sc[...], whh_ref[...], preferred_element_type=jnp.float32)
        # Prepared gate order (i, f, o, g): sigmoid on one 3*Hp slab, tanh on
        # the last Hp slab; all slices lane-aligned (Hp multiple of 128).
        sig = jax.nn.sigmoid(gates[:, 0:3 * hp])
        i_g = sig[:, 0 * hp:1 * hp]
        f_g = sig[:, 1 * hp:2 * hp]
        o_g = sig[:, 2 * hp:3 * hp]
        g_g = jnp.tanh(gates[:, 3 * hp:4 * hp])
        c_new = f_g * c_sc[...] + i_g * g_g
        h_new = o_g * jnp.tanh(c_new)
        c_sc[...] = c_new
        h_sc[...] = h_new.astype(h_sc.dtype)      # bf16 shadow of h
        out_ref[t] = h_new.astype(out_ref.dtype)  # lane-dense f32 output row


# ---------------------------------------------------------------------------
# Sizing helpers
# ---------------------------------------------------------------------------
def _choose_time_chunk(T, bb, inp, hp, w_isz, act_isz):
    """Largest even time chunk whose working set fits the per-core VMEM budget.

    Kernel 1 and kernel 2 are budgeted separately; weights/bias are counted
    once (they are single-buffered via pl.Buffered(1)); activation blocks are
    counted double-buffered.
    """
    G = 4 * hp
    budget = _vmem_budget()
    per_t_proj = 2 * bb * (inp * 4 + G * act_isz)          # x in + xproj out
    per_t_rec = 2 * bb * (G * act_isz + hp * 4)            # xproj in + h out
    per_t = max(per_t_proj, per_t_rec)
    fixed_proj = inp * G * w_isz + G * 4
    fixed_rec = hp * G * w_isz + bb * hp * (4 + w_isz)     # whh + c/h scratch
    fixed = max(fixed_proj, fixed_rec)
    avail = budget - fixed
    tc_max = avail // per_t if avail > per_t else 1
    tc_max = int(max(1, min(T, 128, tc_max)))
    # Even chunking: avoid padding nearly a whole chunk of wasted timesteps.
    n_chunks = -(-T // tc_max)
    tc = -(-T // n_chunks)
    return int(tc)


# ---------------------------------------------------------------------------
# One LSTM layer on padded activations
# ---------------------------------------------------------------------------
def lstm_layer_padded(xp, layer, *, time_chunk, batch_block):
    """xp: (Tp, Bp, Inp) float32, zero-padded.  Returns (Tp, Bp, Hp) float32;
    padded hidden columns stay exactly zero (padded W columns / bias are zero).
    """
    Tp, Bp, Inp = xp.shape
    Hp = layer["Hp"]
    G = 4 * Hp
    tc, bb = time_chunk, batch_block
    nb, nc = Bp // bb, Tp // tc
    w_dtype = layer["wih"].dtype
    w_isz = jnp.dtype(w_dtype).itemsize
    act_dtype = w_dtype            # xproj stored in the matmul dtype
    act_isz = jnp.dtype(act_dtype).itemsize

    def const_spec(shape, single_buf):
        # Constant-index weight / bias block: one buffer is enough.
        if single_buf:
            return pl.BlockSpec(shape, lambda b, c: (0, 0),
                                pipeline_mode=pl.Buffered(1))
        return pl.BlockSpec(shape, lambda b, c: (0, 0))

    # --- 1) big parallel GEMM: xproj = x @ W_ih^T + b ------------------------
    proj_bytes = (2 * tc * bb * Inp * 4 + 2 * Inp * G * w_isz
                  + 2 * tc * bb * G * act_isz + 2 * G * 4)

    def run_proj(single_buf):
        return pl.pallas_call(
            _input_proj_kernel,
            out_shape=jax.ShapeDtypeStruct((Tp, Bp, G), act_dtype),
            grid_spec=pltpu.PrefetchScalarGridSpec(
                num_scalar_prefetch=0,
                grid=(nb, nc),
                in_specs=[
                    pl.BlockSpec((tc, bb, Inp), lambda b, c: (c, b, 0)),
                    const_spec((Inp, G), single_buf),
                    const_spec((1, G), single_buf),
                ],
                out_specs=pl.BlockSpec((tc, bb, G), lambda b, c: (c, b, 0)),
            ),
            compiler_params=pltpu.CompilerParams(
                dimension_semantics=("parallel", "parallel"),
                vmem_limit_bytes=_vmem_limit(proj_bytes),
            ),
        )(xp, layer["wih"], layer["bias"])

    try:
        xproj = run_proj(True)
    except Exception:
        xproj = run_proj(False)    # fallback if pl.Buffered(1) is rejected

    # --- 2) sequential recurrence over time chunks ---------------------------
    rec_bytes = (2 * tc * bb * G * act_isz + 2 * Hp * G * w_isz
                 + 2 * tc * bb * Hp * 4 + bb * Hp * (4 + w_isz))

    def run_rec(single_buf):
        return pl.pallas_call(
            _lstm_recurrent_kernel,
            out_shape=jax.ShapeDtypeStruct((Tp, Bp, Hp), jnp.float32),
            grid_spec=pltpu.PrefetchScalarGridSpec(
                num_scalar_prefetch=0,
                grid=(nb, nc),
                in_specs=[
                    pl.BlockSpec((tc, bb, G), lambda b, c: (c, b, 0)),
                    const_spec((Hp, G), single_buf),
                ],
                out_specs=pl.BlockSpec((tc, bb, Hp), lambda b, c: (c, b, 0)),
                scratch_shapes=[
                    pltpu.VMEM((bb, Hp), w_dtype),      # h state (matmul dtype)
                    pltpu.VMEM((bb, Hp), jnp.float32),  # c state (f32)
                ],
            ),
            compiler_params=pltpu.CompilerParams(
                # Batch blocks are independent recurrences (split only on
                # multi-TC chips); time is the sequential carried axis.
                dimension_semantics=("parallel", "arbitrary"),
                vmem_limit_bytes=_vmem_limit(rec_bytes),
            ),
        )(xproj, layer["whh"])

    try:
        out = run_rec(True)
    except Exception:
        out = run_rec(False)
    return out


# ---------------------------------------------------------------------------
# Parameters & prepared weights
# ---------------------------------------------------------------------------
class RNNCoreParams:
    """Deterministically-initialized parameters mirroring RNNCore.__init__."""

    def __init__(self, key, vocabulary_size, embedding_size, hidden_size,
                 num_layers, pad_id):
        self.vocabulary_size = vocabulary_size
        self.embedding_size = embedding_size
        self.hidden_size = hidden_size
        self.num_layers = num_layers
        self.pad_id = pad_id

        keys = jax.random.split(key, 1 + 4 * num_layers)
        init_range = 0.1
        # embedding.weight.data.uniform_(-0.1, 0.1)
        self.emb_weight = jax.random.uniform(
            keys[0], (vocabulary_size, embedding_size),
            minval=-init_range, maxval=init_range, dtype=jnp.float32)

        self.lstm_params = []
        H = hidden_size  # num_directions == 1 (bidirectional=False)
        for i in range(num_layers):
            in_size = embedding_size if i == 0 else hidden_size
            k = 1.0 / jnp.sqrt(H)
            kw = keys[1 + 4 * i: 1 + 4 * (i + 1)]
            w_ih = jax.random.uniform(kw[0], (4 * H, in_size), minval=-k, maxval=k)
            w_hh = jax.random.uniform(kw[1], (4 * H, H), minval=-k, maxval=k)
            b_ih = jax.random.uniform(kw[2], (4 * H,), minval=-k, maxval=k)
            b_hh = jax.random.uniform(kw[3], (4 * H,), minval=-k, maxval=k)
            self.lstm_params.append((w_ih, w_hh, b_ih, b_hh))


# PyTorch LSTM gate order is (i, f, g, o); kernel layout is (i, f, o, g) so
# the three sigmoid gates are one contiguous slab.
_GATE_PERM = jnp.array([0, 1, 3, 2], dtype=jnp.int32)


def prepare_rnn_core(params: RNNCoreParams, matmul_dtype=jnp.bfloat16):
    """Transpose / gate-permute / pad / bias-fold / dtype-cast weights once
    (hoisted out of the forward pass).  Padded weight columns and bias entries
    are zero so padded hidden columns remain exactly zero in the recurrence."""
    layers = []
    for (w_ih, w_hh, b_ih, b_hh) in params.lstm_params:
        fourH, In = w_ih.shape
        H = fourH // 4
        Hp = _round_up(H, 128)
        Inp = _round_up(In, 128)
        wih_t = jnp.transpose(w_ih).reshape(In, 4, H)
        wih_t = jnp.take(wih_t, _GATE_PERM, axis=1)
        wih_t = jnp.pad(wih_t, ((0, Inp - In), (0, 0), (0, Hp - H)))
        wih_t = wih_t.reshape(Inp, 4 * Hp).astype(matmul_dtype)
        whh_t = jnp.transpose(w_hh).reshape(H, 4, H)
        whh_t = jnp.take(whh_t, _GATE_PERM, axis=1)
        whh_t = jnp.pad(whh_t, ((0, Hp - H), (0, 0), (0, Hp - H)))
        whh_t = whh_t.reshape(Hp, 4 * Hp).astype(matmul_dtype)
        bias = (b_ih + b_hh).reshape(4, H)
        bias = jnp.take(bias, _GATE_PERM, axis=0)
        bias = jnp.pad(bias, ((0, 0), (0, Hp - H)))
        bias = bias.reshape(1, 4 * Hp).astype(jnp.float32)
        layers.append(dict(wih=wih_t, whh=whh_t, bias=bias,
                           H=H, In=In, Hp=Hp, Inp=Inp))
    return dict(emb_weight=params.emb_weight, layers=layers,
                hidden_size=params.hidden_size,
                embedding_size=params.embedding_size)


# ---------------------------------------------------------------------------
# Forward pass (eval mode)
# ---------------------------------------------------------------------------
def rnn_core_forward(prepared, tokens):
    """Mirror RNNCore.forward in eval mode. tokens: (T, B) int32 (seq-first).

    Returns (raw_outputs, outputs): lists of (T, B, H) float32 arrays, one per
    layer. In eval mode hidden dropout is identity, so outputs == raw_outputs.
    """
    T, B = tokens.shape
    layers = prepared["layers"]
    H = prepared["hidden_size"]
    Ep = layers[0]["Inp"]

    # Embedding lookup glue (EmbeddingDropout / RNNDropout identity in eval;
    # padding_idx only affects gradients, not the forward lookup).
    emb = jnp.take(prepared["emb_weight"], tokens, axis=0).astype(jnp.float32)

    mm_dtype = layers[0]["wih"].dtype
    act_isz = jnp.dtype(mm_dtype).itemsize
    w_isz = act_isz
    # bf16 activation blocks need a (16,128) sublane tile; f32 needs (8,128).
    bp_mult = 16 if act_isz == 2 else 8
    Bp = _round_up(B, bp_mult)

    # Split the batch across TensorCores only when the chip actually has more
    # than one (v7x); on v5e/v6e splitting would just double the serial loop.
    _, n_cores = _tpu_generation()
    if n_cores > 1 and Bp % (n_cores * bp_mult) == 0:
        bb = Bp // n_cores
    else:
        bb = Bp

    max_inp = max(l["Inp"] for l in layers)
    max_hp = max(l["Hp"] for l in layers)
    tc = _choose_time_chunk(T, bb, max_inp, max_hp, w_isz, act_isz)
    Tp = _round_up(T, tc)   # with even chunking the time padding is < n_chunks

    xp = jnp.pad(emb, ((0, Tp - T), (0, Bp - B), (0, Ep - emb.shape[-1])))

    raw_outputs, outputs = [], []
    for layer in layers:
        xp = lstm_layer_padded(xp, layer, time_chunk=tc, batch_block=bb)
        raw = xp[:T, :B, :layer["H"]]
        raw_outputs.append(raw)
        # hidden_dropout is identity in eval mode (i != num_layers - 1 branch).
        outputs.append(raw)
    return raw_outputs, outputs


# ---------------------------------------------------------------------------
# Pure-JAX reference (mirrors the kernel's dtype strategy for tight checking)
# ---------------------------------------------------------------------------
def _reference_forward(params: RNNCoreParams, tokens, matmul_dtype):
    x = jnp.take(params.emb_weight, tokens, axis=0).astype(jnp.float32)
    outs = []
    for (w_ih, w_hh, b_ih, b_hh) in params.lstm_params:
        T, B, In = x.shape
        H = w_hh.shape[1]
        wih = w_ih.astype(matmul_dtype)
        whh = w_hh.astype(matmul_dtype)
        bias = (b_ih + b_hh).astype(jnp.float32)
        xproj = jnp.dot(x.reshape(T * B, In).astype(matmul_dtype), wih.T,
                        preferred_element_type=jnp.float32).reshape(T, B, 4 * H) + bias
        # Kernel stores the xproj intermediate in the matmul dtype.
        xproj = xproj.astype(matmul_dtype)
        h = jnp.zeros((B, H), jnp.float32)
        c = jnp.zeros((B, H), jnp.float32)
        ys = []
        for t in range(T):
            gates = xproj[t].astype(jnp.float32) + jnp.dot(
                h.astype(matmul_dtype), whh.T, preferred_element_type=jnp.float32)
            i_g = jax.nn.sigmoid(gates[:, 0 * H:1 * H])
            f_g = jax.nn.sigmoid(gates[:, 1 * H:2 * H])
            g_g = jnp.tanh(gates[:, 2 * H:3 * H])
            o_g = jax.nn.sigmoid(gates[:, 3 * H:4 * H])
            c = f_g * c + i_g * g_g
            h = o_g * jnp.tanh(c)
            ys.append(h)
        x = jnp.stack(ys, axis=0)
        outs.append(x)
    return outs


if __name__ == "__main__":
    # Small shapes consistent with the module's forward:
    # tokens (seq_len=8, batch=2), vocab=100, emb=32, hidden=32, layers=2
    vocab, emb, hidden, n_layers, pad_id = 100, 32, 32, 2, 0
    T, B = 8, 2

    key = jax.random.PRNGKey(0)
    k_param, k_tok = jax.random.split(key)
    params = RNNCoreParams(k_param, vocab, emb, hidden, n_layers, pad_id)
    tokens = jax.random.randint(k_tok, (T, B), 0, vocab, dtype=jnp.int32)

    # --- float32 weights: tight check against the pure-JAX reference ---------
    prepared_f32 = prepare_rnn_core(params, matmul_dtype=jnp.float32)
    raw_f32, out_f32 = rnn_core_forward(prepared_f32, tokens)
    raw_f32 = [jax.block_until_ready(o) for o in raw_f32]
    ref_f32 = _reference_forward(params, tokens, jnp.float32)
    for i in range(n_layers):
        err = float(jnp.max(jnp.abs(ref_f32[i] - raw_f32[i])))
        assert err < 1e-4, f"f32 layer {i} mismatch: {err}"

    # --- default bfloat16 weights/xproj for the MXU (gate math + c stay f32) --
    prepared_bf16 = prepare_rnn_core(params)    # matmul_dtype=bfloat16 default
    raw_bf16, out_bf16 = rnn_core_forward(prepared_bf16, tokens)
    raw_bf16 = [jax.block_until_ready(o) for o in raw_bf16]
    ref_bf16 = _reference_forward(params, tokens, jnp.bfloat16)
    for i in range(n_layers):
        err = float(jnp.max(jnp.abs(ref_bf16[i] - raw_bf16[i])))
        assert err < 3e-2, f"bf16 layer {i} mismatch vs matched ref: {err}"
        err2 = float(jnp.max(jnp.abs(ref_f32[i] - raw_bf16[i])))
        assert err2 < 1e-1, f"bf16 layer {i} mismatch vs f32 ref: {err2}"

    assert raw_f32[-1].shape == (T, B, hidden)
    assert out_f32[-1].shape == (T, B, hidden)
    assert raw_bf16[-1].shape == (T, B, hidden)
    print("KERNEL_OK")
</pallas_src>

<mosaic_0001>
module attributes {stable_mosaic.version = 11 : i64} {
  func.func @_input_proj_kernel(%arg0: i32, %arg1: i32, %arg2: memref<8x8x128xf32, #tpu.memory_space<vmem>>, %arg3: memref<128x512xf32, #tpu.memory_space<vmem>>, %arg4: memref<1x512xf32, #tpu.memory_space<vmem>>, %arg5: memref<8x8x512xf32, #tpu.memory_space<vmem>>) attributes {dimension_semantics = [#tpu.dimension_semantics<parallel>, #tpu.dimension_semantics<parallel>], iteration_bounds = array<i64: 1, 1>, scalar_prefetch = 0 : i64, scratch_operands = 0 : i64, tpu.core_type = #tpu.core_type<tc>, window_params = [{transform_indices = @transform_0, window_bounds = array<i64: 8, 8, 128>}, {pipeline_mode = #tpu.pipeline_mode<synchronous>, transform_indices = @transform_1, window_bounds = array<i64: 128, 512>}, {pipeline_mode = #tpu.pipeline_mode<synchronous>, transform_indices = @transform_2, window_bounds = array<i64: 1, 512>}, {transform_indices = @transform_3, window_bounds = array<i64: 8, 8, 512>}]} {
    %c0 = arith.constant 0 : index
    %c0_0 = arith.constant 0 : index
    %c0_1 = arith.constant 0 : index
    %0 = vector.load %arg2[%c0, %c0_0, %c0_1] : memref<8x8x128xf32, #tpu.memory_space<vmem>>, vector<8x8x128xf32>
    %1 = vector.shape_cast %0 : vector<8x8x128xf32> to vector<64x128xf32>
    %c0_2 = arith.constant 0 : index
    %c0_3 = arith.constant 0 : index
    %2 = vector.load %arg3[%c0_2, %c0_3] : memref<128x512xf32, #tpu.memory_space<vmem>>, vector<128x512xf32>
    %cst = arith.constant dense<0.000000e+00> : vector<64x512xf32>
    %3 = tpu.matmul %1, %2, %cst {dimension_numbers = #tpu.dot_dimension_numbers<[1], [0], [0], [1], [0, 0, 1, 1], [], []>} : vector<64x128xf32>, vector<128x512xf32>, vector<64x512xf32> -> vector<64x512xf32>
    %c0_4 = arith.constant 0 : index
    %c0_5 = arith.constant 0 : index
    %4 = vector.load %arg4[%c0_4, %c0_5] : memref<1x512xf32, #tpu.memory_space<vmem>>, vector<1x512xf32>
    %5 = vector.broadcast %4 : vector<1x512xf32> to vector<64x512xf32>
    %6 = arith.addf %3, %5 : vector<64x512xf32>
    %7 = vector.shape_cast %6 : vector<64x512xf32> to vector<8x8x512xf32>
    %c0_6 = arith.constant 0 : index
    %c0_7 = arith.constant 0 : index
    %c0_8 = arith.constant 0 : index
    %8 = vector.load %arg5[%c0_6, %c0_7, %c0_8] : memref<8x8x512xf32, #tpu.memory_space<vmem>>, vector<8x8x512xf32>
    tpu.vector_store %arg5[%c0_6, %c0_7, %c0_8], %7 {strides = array<i32>} : memref<8x8x512xf32, #tpu.memory_space<vmem>>, vector<8x8x512xf32>,
    return
  }
  func.func @transform_0(%arg0: i32, %arg1: i32) -> (i32, i32, i32) {
    %c0_i32 = arith.constant 0 : i32
    %c0_i32_0 = arith.constant 0 : i32
    return %arg1, %arg0, %c0_i32 : i32, i32, i32
  }
  func.func @transform_1(%arg0: i32, %arg1: i32) -> (i32, i32) {
    %c0_i32 = arith.constant 0 : i32
    %c0_i32_0 = arith.constant 0 : i32
    %c0_i32_1 = arith.constant 0 : i32
    return %c0_i32, %c0_i32_0 : i32, i32
  }
  func.func @transform_2(%arg0: i32, %arg1: i32) -> (i32, i32) {
    %c0_i32 = arith.constant 0 : i32
    %c0_i32_0 = arith.constant 0 : i32
    %c0_i32_1 = arith.constant 0 : i32
    return %c0_i32, %c0_i32_0 : i32, i32
  }
  func.func @transform_3(%arg0: i32, %arg1: i32) -> (i32, i32, i32) {
    %c0_i32 = arith.constant 0 : i32
    %c0_i32_0 = arith.constant 0 : i32
    return %arg1, %arg0, %c0_i32 : i32, i32, i32
  }
}

module attributes {stable_mosaic.version = 11 : i64} {
  func.func @_input_proj_kernel(%arg0: i32, %arg1: i32, %arg2: memref<8x8x128xf32, #tpu.memory_space<vmem>>, %arg3: memref<128x512xf32, #tpu.memory_space<vmem>>, %arg4: memref<1x512xf32, #tpu.memory_space<vmem>>, %arg5: memref<8x8x512xf32, #tpu.memory_space<vmem>>) attributes {dimension_semantics = [#tpu.dimension_semantics<parallel>, #tpu.dimension_semantics<parallel>], iteration_bounds = array<i64: 1, 1>, scalar_prefetch = 0 : i64, scratch_operands = 0 : i64, tpu.core_type = #tpu.core_type<tc>, window_params = [{transform_indices = @transform_0, window_bounds = array<i64: 8, 8, 128>}, {pipeline_mode = #tpu.pipeline_mode<synchronous>, transform_indices = @transform_1, window_bounds = array<i64: 128, 512>}, {pipeline_mode = #tpu.pipeline_mode<synchronous>, transform_indices = @transform_2, window_bounds = array<i64: 1, 512>}, {transform_indices = @transform_3, window_bounds = array<i64: 8, 8, 512>}]} {
    %c0 = arith.constant 0 : index
    %c0_0 = arith.constant 0 : index
    %c0_1 = arith.constant 0 : index
    %0 = vector.load %arg2[%c0, %c0_0, %c0_1] : memref<8x8x128xf32, #tpu.memory_space<vmem>>, vector<8x8x128xf32>
    %1 = vector.shape_cast %0 : vector<8x8x128xf32> to vector<64x128xf32>
    %c0_2 = arith.constant 0 : index
    %c0_3 = arith.constant 0 : index
    %2 = vector.load %arg3[%c0_2, %c0_3] : memref<128x512xf32, #tpu.memory_space<vmem>>, vector<128x512xf32>
    %cst = arith.constant dense<0.000000e+00> : vector<64x512xf32>
    %3 = tpu.matmul %1, %2, %cst {dimension_numbers = #tpu.dot_dimension_numbers<[1], [0], [0], [1], [0, 0, 1, 1], [], []>} : vector<64x128xf32>, vector<128x512xf32>, vector<64x512xf32> -> vector<64x512xf32>
    %c0_4 = arith.constant 0 : index
    %c0_5 = arith.constant 0 : index
    %4 = vector.load %arg4[%c0_4, %c0_5] : memref<1x512xf32, #tpu.memory_space<vmem>>, vector<1x512xf32>
    %5 = vector.broadcast %4 : vector<1x512xf32> to vector<64x512xf32>
    %6 = arith.addf %3, %5 : vector<64x512xf32>
    %7 = vector.shape_cast %6 : vector<64x512xf32> to vector<8x8x512xf32>
    %c0_6 = arith.constant 0 : index
    %c0_7 = arith.constant 0 : index
    %c0_8 = arith.constant 0 : index
    %8 = vector.load %arg5[%c0_6, %c0_7, %c0_8] : memref<8x8x512xf32, #tpu.memory_space<vmem>>, vector<8x8x512xf32>
    tpu.vector_store %arg5[%c0_6, %c0_7, %c0_8], %7 {strides = array<i32>} : memref<8x8x512xf32, #tpu.memory_space<vmem>>, vector<8x8x512xf32>,
    return
  }
  func.func @transform_0(%arg0: i32, %arg1: i32) -> (i32, i32, i32) {
    %c0_i32 = arith.constant 0 : i32
    %c0_i32_0 = arith.constant 0 : i32
    return %arg1, %arg0, %c0_i32 : i32, i32, i32
  }
  func.func @transform_1(%arg0: i32, %arg1: i32) -> (i32, i32) {
    %c0_i32 = arith.constant 0 : i32
    %c0_i32_0 = arith.constant 0 : i32
    %c0_i32_1 = arith.constant 0 : i32
    return %c0_i32, %c0_i32_0 : i32, i32
  }
  func.func @transform_2(%arg0: i32, %arg1: i32) -> (i32, i32) {
    %c0_i32 = arith.constant 0 : i32
    %c0_i32_0 = arith.constant 0 : i32
    %c0_i32_1 = arith.constant 0 : i32
    return %c0_i32, %c0_i32_0 : i32, i32
  }
  func.func @transform_3(%arg0: i32, %arg1: i32) -> (i32, i32, i32) {
    %c0_i32 = arith.constant 0 : i32
    %c0_i32_0 = arith.constant 0 : i32
    return %arg1, %arg0, %c0_i32 : i32, i32, i32
  }
}

</mosaic_0001>

<llo_original>
// kernel: tpu_custom_call.1
$region0: #{tpu_custom_call.1}
  #allocation0 [shape = 'u32[]', space=smem, size = 0x4, offset = 0x4, fixed_abs, tag = 'smem constant byte address 0x4 - core index']
  #allocation1 [shape = 'u32[72,128]{1,0:T(1,128)}', space=vmem, size = 0x9000, scoped, tag = 'internal scratch']
  %s0 = inlined_call_operand.hbm [shape: f32[8,8,128], index: 0, kind: input, shape index: {}]
  %s1 = inlined_call_operand.hbm [shape: f32[128,512], index: 1, kind: input, shape index: {}]
  %s2 = inlined_call_operand.hbm [shape: f32[1,512], index: 2, kind: input, shape index: {}]
  %s3 = inlined_call_operand.hbm [shape: f32[8,8,512], index: 3, kind: output, shape index: {}]
  %s4 = sld [smem:[#allocation0]]
  $region34: #{tpu_custom_call.1} parent=0
    _
  %s6 = ssub.s32 1, %s4
  %s7 = scalar_select 0, %s6, %s4
  $region1: #{tpu_custom_call.1} parent=0
    #allocation2 [shape = 'u8[32768]{0}', space=vmem, size = 0x8000, scoped, tag = 'input window, operand 0, single buffered']
    #allocation3 [shape = 's32[1]{0}', space=sflag, size = 0x4, scoped, tag = 'scoped memory for tpu_custom_call.1']
    #allocation4 [shape = 's32[1]{0}', space=sflag, size = 0x4, scoped, tag = 'scoped memory for tpu_custom_call.1']
    #allocation5 [shape = 'u8[262144]{0}', space=vmem, size = 0x40000, scoped, tag = 'input window, operand 1, single buffered']
    #allocation6 [shape = 's32[1]{0}', space=sflag, size = 0x4, scoped, tag = 'scoped memory for tpu_custom_call.1']
    #allocation7 [shape = 'u8[2048]{0}', space=vmem, size = 0x800, scoped, tag = 'input window, operand 2, single buffered']
    #allocation8 [shape = 'u8[131072]{0}', space=vmem, size = 0x20000, scoped, tag = 'output window, operand 0, single buffered']
    %8 = vsyncpa [#allocation3], 0
    %9 = vsyncpa [#allocation6], 0
    %10 = vsyncpa [#allocation4], 0
    // Predicated region
    $region2: #{tpu_custom_call.1} parent=1 // pred_check
      _
    $region3: #{tpu_custom_call.1} parent=1 // pred_check_branch
      %12 = sbr.rel (0) target = $region5
    $region4: #{tpu_custom_call.1} parent=1 // pred_region
      %14 = vsyncadd [#allocation3], 0
      %s15 = sshll.u32 %s0, 4
      %s16 = int_to_ptr.hbm [resolvable:$true] %s15
      %s17 = sshll.u32 [#allocation2], 4
      %s18 = int_to_ptr.vmem [resolvable:$true] %s17
      %23 = dma.hbm_to_vmem [thread:$0]  %s16, 1024, %s18, [#allocation3], 128, 128, 8
    $region5: #{tpu_custom_call.1} parent=1 // pred_fallthru
      _
    // Predicated region
    $region6: #{tpu_custom_call.1} parent=1 // pred_check
      _
    $region7: #{tpu_custom_call.1} parent=1 // pred_check_branch
      %25 = sbr.rel (0) target = $region9
    $region8: #{tpu_custom_call.1} parent=1 // pred_region
      %27 = vsyncadd [#allocation6], 0
      %s28 = sshll.u32 %s1, 4
      %s29 = int_to_ptr.hbm [resolvable:$true] %s28
      %s30 = sshll.u32 [#allocation5], 4
      %s31 = int_to_ptr.vmem [resolvable:$true] %s30
      %36 = dma.hbm_to_vmem [thread:$0]  %s29, 8192, %s31, [#allocation6], 512, 512, 32
    $region9: #{tpu_custom_call.1} parent=1 // pred_fallthru
      _
    // Predicated region
    $region10: #{tpu_custom_call.1} parent=1 // pred_check
      _
    $region11: #{tpu_custom_call.1} parent=1 // pred_check_branch
      %38 = sbr.rel (0) target = $region13
    $region12: #{tpu_custom_call.1} parent=1 // pred_region
      %40 = vsyncadd [#allocation6], 0
      %s42 = sshll.u32 %s2, 4
      %s43 = int_to_ptr.hbm [resolvable:$true] %s42
      %s44 = sshll.u32 [#allocation7], 4
      %s45 = int_to_ptr.vmem [resolvable:$true] %s44
      %47 = dma.hbm_to_vmem [thread:$0]  %s43, 64, %s45, [#allocation6]
    $region13: #{tpu_custom_call.1} parent=1 // pred_fallthru
      _
    // Predicated region
    $region14: #{tpu_custom_call.1} parent=1 // pred_check
      _
    $region15: #{tpu_custom_call.1} parent=1 // pred_check_branch
      %49 = sbr.rel (0) target = $region17
    $region16: #{tpu_custom_call.1} parent=1 // pred_region
      %51 = dma.done [#allocation3], 1024
    $region17: #{tpu_custom_call.1} parent=1 // pred_fallthru
      _
    // Predicated region
    $region18: #{tpu_custom_call.1} parent=1 // pred_check
      _
    $region19: #{tpu_custom_call.1} parent=1 // pred_check_branch
      %53 = sbr.rel (0) target = $region21
    $region20: #{tpu_custom_call.1} parent=1 // pred_region
      %55 = dma.done [#allocation6], 8192
    $region21: #{tpu_custom_call.1} parent=1 // pred_fallthru
      _
    // Predicated region
    $region22: #{tpu_custom_call.1} parent=1 // pred_check
      _
    $region23: #{tpu_custom_call.1} parent=1 // pred_check_branch
      %57 = sbr.rel (0) target = $region25
    $region24: #{tpu_custom_call.1} parent=1 // pred_region
      %59 = dma.done [#allocation6], 64
    $region25: #{tpu_custom_call.1} parent=1 // pred_fallthru
      _
    %v60 = vld [vmem:[#allocation2] sm:$0xff]
    %v61 = vld [vmem:[#allocation2 + $0x8] sm:$0xff]
    %v62 = vld [vmem:[#allocation2 + $0x10] sm:$0xff]
    %v63 = vld [vmem:[#allocation2 + $0x18] sm:$0xff]
    %v64 = vld [vmem:[#allocation2 + $0x20] sm:$0xff]
    %v65 = vld [vmem:[#allocation2 + $0x28] sm:$0xff]
    %v66 = vld [vmem:[#allocation2 + $0x30] sm:$0xff]
    %v67 = vld [vmem:[#allocation2 + $0x38] sm:$0xff]
    %v68 = vld [vmem:[#allocation5] sm:$0xff]
    %v69 = vld [vmem:[#allocation5 + $0x8] sm:$0xff]
    %v70 = vld [vmem:[#allocation5 + $0x10] sm:$0xff]
    %v71 = vld [vmem:[#allocation5 + $0x18] sm:$0xff]
    %v72 = vld [vmem:[#allocation5 + $0x20] sm:$0xff]
    %v73 = vld [vmem:[#allocation5 + $0x28] sm:$0xff]
    %v74 = vld [vmem:[#allocation5 + $0x30] sm:$0xff]
    %v75 = vld [vmem:[#allocation5 + $0x38] sm:$0xff]
    %v76 = vld [vmem:[#allocation5 + $0x40] sm:$0xff]
    %v77 = vld [vmem:[#allocation5 + $0x48] sm:$0xff]
    %v78 = vld [vmem:[#allocation5 + $0x50] sm:$0xff]
    %v79 = vld [vmem:[#allocation5 + $0x58] sm:$0xff]
    %v80 = vld [vmem:[#allocation5 + $0x60] sm:$0xff]
    %v81 = vld [vmem:[#allocation5 + $0x68] sm:$0xff]
    %v82 = vld [vmem:[#allocation5 + $0x70] sm:$0xff]
    %v83 = vld [vmem:[#allocation5 + $0x78] sm:$0xff]
    %v84 = vld [vmem:[#allocation5 + $0x80] sm:$0xff]
    %v85 = vld [vmem:[#allocation5 + $0x88] sm:$0xff]
    %v86 = vld [vmem:[#allocation5 + $0x90] sm:$0xff]
    %v87 = vld [vmem:[#allocation5 + $0x98] sm:$0xff]
    %v88 = vld [vmem:[#allocation5 + $0xa0] sm:$0xff]
    %v89 = vld [vmem:[#allocation5 + $0xa8] sm:$0xff]
    %v90 = vld [vmem:[#allocation5 + $0xb0] sm:$0xff]
    %v91 = vld [vmem:[#allocation5 + $0xb8] sm:$0xff]
    %v92 = vld [vmem:[#allocation5 + $0xc0] sm:$0xff]
    %v93 = vld [vmem:[#allocation5 + $0xc8] sm:$0xff]
    %v94 = vld [vmem:[#allocation5 + $0xd0] sm:$0xff]
    %v95 = vld [vmem:[#allocation5 + $0xd8] sm:$0xff]
    %v96 = vld [vmem:[#allocation5 + $0xe0] sm:$0xff]
    %v97 = vld [vmem:[#allocation5 + $0xe8] sm:$0xff]
    %v98 = vld [vmem:[#allocation5 + $0xf0] sm:$0xff]
    %v99 = vld [vmem:[#allocation5 + $0xf8] sm:$0xff]
    %v100 = vld [vmem:[#allocation5 + $0x100] sm:$0xff]
    %v101 = vld [vmem:[#allocation5 + $0x108] sm:$0xff]
    %v102 = vld [vmem:[#allocation5 + $0x110] sm:$0xff]
    %v103 = vld [vmem:[#allocation5 + $0x118] sm:$0xff]
    %v104 = vld [vmem:[#allocation5 + $0x120] sm:$0xff]
    %v105 = vld [vmem:[#allocation5 + $0x128] sm:$0xff]
    %v106 = vld [vmem:[#allocation5 + $0x130] sm:$0xff]
    %v107 = vld [vmem:[#allocation5 + $0x138] sm:$0xff]
    %v108 = vld [vmem:[#allocation5 + $0x140] sm:$0xff]
    %v109 = vld [vmem:[#allocation5 + $0x148] sm:$0xff]
    %v110 = vld [vmem:[#allocation5 + $0x150] sm:$0xff]
    %v111 = vld [vmem:[#allocation5 + $0x158] sm:$0xff]
    %v112 = vld [vmem:[#allocation5 + $0x160] sm:$0xff]
    %v113 = vld [vmem:[#allocation5 + $0x168] sm:$0xff]
    %v114 = vld [vmem:[#allocation5 + $0x170] sm:$0xff]
    %v115 = vld [vmem:[#allocation5 + $0x178] sm:$0xff]
    %v116 = vld [vmem:[#allocation5 + $0x180] sm:$0xff]
    %v117 = vld [vmem:[#allocation5 + $0x188] sm:$0xff]
    %v118 = vld [vmem:[#allocation5 + $0x190] sm:$0xff]
    %v119 = vld [vmem:[#allocation5 + $0x198] sm:$0xff]
    %v120 = vld [vmem:[#allocation5 + $0x1a0] sm:$0xff]
    %v121 = vld [vmem:[#allocation5 + $0x1a8] sm:$0xff]
    %v122 = vld [vmem:[#allocation5 + $0x1b0] sm:$0xff]
    %v123 = vld [vmem:[#allocation5 + $0x1b8] sm:$0xff]
    %v124 = vld [vmem:[#allocation5 + $0x1c0] sm:$0xff]
    %v125 = vld [vmem:[#allocation5 + $0x1c8] sm:$0xff]
    %v126 = vld [vmem:[#allocation5 + $0x1d0] sm:$0xff]
    %v127 = vld [vmem:[#allocation5 + $0x1d8] sm:$0xff]
    %v128 = vld [vmem:[#allocation5 + $0x1e0] sm:$0xff]
    %v129 = vld [vmem:[#allocation5 + $0x1e8] sm:$0xff]
    %v130 = vld [vmem:[#allocation5 + $0x1f0] sm:$0xff]
    %v131 = vld [vmem:[#allocation5 + $0x1f8] sm:$0xff]
    %v132 = vld [vmem:[#allocation7] sm:$0xf]
    %v134 = vperm.slane %v132, 0
    %v135 = vperm.slane %v132, 1
    %v136 = vperm.slane %v132, 2
    %v137 = vperm.slane %v132, 3
    %142 = vmatpush.msra.mxu0 %v128
    %143 = vmatpush.msra.mxu0 %v124
    %144 = vmatpush.msra.mxu0 %v120
    %145 = vmatpush.msra.mxu0 %v116
    %146 = vmatpush.msra.mxu0 %v112
    %147 = vmatpush.msra.mxu0 %v108
    %148 = vmatpush.msra.mxu0 %v104
    %149 = vmatpush.msra.mxu0 %v100
    %150 = vmatpush.msra.mxu0 %v96
    %151 = vmatpush.msra.mxu0 %v92
    %152 = vmatpush.msra.mxu0 %v88
    %153 = vmatpush.msra.mxu0 %v84
    %154 = vmatpush.msra.mxu0 %v80
    %155 = vmatpush.msra.mxu0 %v76
    %156 = vmatpush.msra.mxu0 %v72
    %157 = vmatpush.msra.mxu0 %v68
    %158 = vmatmul.f32.gmra.mxu0 %v60
    %v159 = vpop.f32.mrf.mxu0
    %v160 = vadd.f32 %v134, %v159
    %161 = vmatmul.f32.gmra.mxu0 %v61
    %v162 = vpop.f32.mrf.mxu0
    %v163 = vadd.f32 %v134, %v162
    %164 = vmatmul.f32.gmra.mxu0 %v62
    %v165 = vpop.f32.mrf.mxu0
    %v166 = vadd.f32 %v134, %v165
    %167 = vmatmul.f32.gmra.mxu0 %v63
    %v168 = vpop.f32.mrf.mxu0
    %v169 = vadd.f32 %v134, %v168
    %170 = vmatmul.f32.gmra.mxu0 %v64
    %v171 = vpop.f32.mrf.mxu0
    %v172 = vadd.f32 %v134, %v171
    %173 = vmatmul.f32.gmra.mxu0 %v65
    %v174 = vpop.f32.mrf.mxu0
    %v175 = vadd.f32 %v134, %v174
    %176 = vmatmul.f32.gmra.mxu0 %v66
    %v177 = vpop.f32.mrf.mxu0
    %v178 = vadd.f32 %v134, %v177
    %179 = vmatmul.f32.gmra.mxu0 %v67
    %v180 = vpop.f32.mrf.mxu0
    %v181 = vadd.f32 %v134, %v180
    %182 = vdwg.mxu0
    %183 = vmatpush.msra.mxu0 %v129
    %184 = vmatpush.msra.mxu0 %v125
    %185 = vmatpush.msra.mxu0 %v121
    %186 = vmatpush.msra.mxu0 %v117
    %187 = vmatpush.msra.mxu0 %v113
    %188 = vmatpush.msra.mxu0 %v109
    %189 = vmatpush.msra.mxu0 %v105
    %190 = vmatpush.msra.mxu0 %v101
    %191 = vmatpush.msra.mxu0 %v97
    %192 = vmatpush.msra.mxu0 %v93
    %193 = vmatpush.msra.mxu0 %v89
    %194 = vmatpush.msra.mxu0 %v85
    %195 = vmatpush.msra.mxu0 %v81
    %196 = vmatpush.msra.mxu0 %v77
    %197 = vmatpush.msra.mxu0 %v73
    %198 = vmatpush.msra.mxu0 %v69
    %199 = vmatmul.f32.gmra.mxu0 %v60
    %v200 = vpop.f32.mrf.mxu0
    %v201 = vadd.f32 %v135, %v200
    %202 = vmatmul.f32.gmra.mxu0 %v61
    %v203 = vpop.f32.mrf.mxu0
    %v204 = vadd.f32 %v135, %v203
    %205 = vmatmul.f32.gmra.mxu0 %v62
    %v206 = vpop.f32.mrf.mxu0
    %v207 = vadd.f32 %v135, %v206
    %208 = vmatmul.f32.gmra.mxu0 %v63
    %v209 = vpop.f32.mrf.mxu0
    %v210 = vadd.f32 %v135, %v209
    %211 = vmatmul.f32.gmra.mxu0 %v64
    %v212 = vpop.f32.mrf.mxu0
    %v213 = vadd.f32 %v135, %v212
    %214 = vmatmul.f32.gmra.mxu0 %v65
    %v215 = vpop.f32.mrf.mxu0
    %v216 = vadd.f32 %v135, %v215
    %217 = vmatmul.f32.gmra.mxu0 %v66
    %v218 = vpop.f32.mrf.mxu0
    %v219 = vadd.f32 %v135, %v218
    %220 = vmatmul.f32.gmra.mxu0 %v67
    %v221 = vpop.f32.mrf.mxu0
    %v222 = vadd.f32 %v135, %v221
    %223 = vdwg.mxu0
    %224 = vmatpush.msra.mxu0 %v130
    %225 = vmatpush.msra.mxu0 %v126
    %226 = vmatpush.msra.mxu0 %v122
    %227 = vmatpush.msra.mxu0 %v118
    %228 = vmatpush.msra.mxu0 %v114
    %229 = vmatpush.msra.mxu0 %v110
    %230 = vmatpush.msra.mxu0 %v106
    %231 = vmatpush.msra.mxu0 %v102
    %232 = vmatpush.msra.mxu0 %v98
    %233 = vmatpush.msra.mxu0 %v94
    %234 = vmatpush.msra.mxu0 %v90
    %235 = vmatpush.msra.mxu0 %v86
    %236 = vmatpush.msra.mxu0 %v82
    %237 = vmatpush.msra.mxu0 %v78
    %238 = vmatpush.msra.mxu0 %v74
    %239 = vmatpush.msra.mxu0 %v70
    %240 = vmatmul.f32.gmra.mxu0 %v60
    %v241 = vpop.f32.mrf.mxu0
    %v242 = vadd.f32 %v136, %v241
    %243 = vmatmul.f32.gmra.mxu0 %v61
    %v244 = vpop.f32.mrf.mxu0
    %v245 = vadd.f32 %v136, %v244
    %246 = vmatmul.f32.gmra.mxu0 %v62
    %v247 = vpop.f32.mrf.mxu0
    %v248 = vadd.f32 %v136, %v247
    %249 = vmatmul.f32.gmra.mxu0 %v63
    %v250 = vpop.f32.mrf.mxu0
    %v251 = vadd.f32 %v136, %v250
    %252 = vmatmul.f32.gmra.mxu0 %v64
    %v253 = vpop.f32.mrf.mxu0
    %v254 = vadd.f32 %v136, %v253
    %255 = vmatmul.f32.gmra.mxu0 %v65
    %v256 = vpop.f32.mrf.mxu0
    %v257 = vadd.f32 %v136, %v256
    %258 = vmatmul.f32.gmra.mxu0 %v66
    %v259 = vpop.f32.mrf.mxu0
    %v260 = vadd.f32 %v136, %v259
    %261 = vmatmul.f32.gmra.mxu0 %v67
    %v262 = vpop.f32.mrf.mxu0
    %v263 = vadd.f32 %v136, %v262
    %264 = vdwg.mxu0
    %265 = vmatpush.msra.mxu0 %v131
    %266 = vmatpush.msra.mxu0 %v127
    %267 = vmatpush.msra.mxu0 %v123
    %268 = vmatpush.msra.mxu0 %v119
    %269 = vmatpush.msra.mxu0 %v115
    %270 = vmatpush.msra.mxu0 %v111
    %271 = vmatpush.msra.mxu0 %v107
    %272 = vmatpush.msra.mxu0 %v103
    %273 = vmatpush.msra.mxu0 %v99
    %274 = vmatpush.msra.mxu0 %v95
    %275 = vmatpush.msra.mxu0 %v91
    %276 = vmatpush.msra.mxu0 %v87
    %277 = vmatpush.msra.mxu0 %v83
    %278 = vmatpush.msra.mxu0 %v79
    %279 = vmatpush.msra.mxu0 %v75
    %280 = vmatpush.msra.mxu0 %v71
    %281 = vmatmul.f32.gmra.mxu0 %v60
    %v282 = vpop.f32.mrf.mxu0
    %v283 = vadd.f32 %v137, %v282
    %284 = vmatmul.f32.gmra.mxu0 %v61
    %v285 = vpop.f32.mrf.mxu0
    %v286 = vadd.f32 %v137, %v285
    %287 = vmatmul.f32.gmra.mxu0 %v62
    %v288 = vpop.f32.mrf.mxu0
    %v289 = vadd.f32 %v137, %v288
    %290 = vmatmul.f32.gmra.mxu0 %v63
    %v291 = vpop.f32.mrf.mxu0
    %v292 = vadd.f32 %v137, %v291
    %293 = vmatmul.f32.gmra.mxu0 %v64
    %v294 = vpop.f32.mrf.mxu0
    %v295 = vadd.f32 %v137, %v294
    %296 = vmatmul.f32.gmra.mxu0 %v65
    %v297 = vpop.f32.mrf.mxu0
    %v298 = vadd.f32 %v137, %v297
    %299 = vmatmul.f32.gmra.mxu0 %v66
    %v300 = vpop.f32.mrf.mxu0
    %v301 = vadd.f32 %v137, %v300
    %302 = vmatmul.f32.gmra.mxu0 %v67
    %v303 = vpop.f32.mrf.mxu0
    %v304 = vadd.f32 %v137, %v303
    %305 = vdwg.mxu0
    %306 = vst [vmem:[#allocation8] sm:$0xff] %v160
    %307 = vst [vmem:[#allocation8 + $0x8] sm:$0xff] %v201
    %308 = vst [vmem:[#allocation8 + $0x10] sm:$0xff] %v242
    %309 = vst [vmem:[#allocation8 + $0x18] sm:$0xff] %v283
    %310 = vst [vmem:[#allocation8 + $0x20] sm:$0xff] %v163
    %311 = vst [vmem:[#allocation8 + $0x28] sm:$0xff] %v204
    %312 = vst [vmem:[#allocation8 + $0x30] sm:$0xff] %v245
    %313 = vst [vmem:[#allocation8 + $0x38] sm:$0xff] %v286
    %314 = vst [vmem:[#allocation8 + $0x40] sm:$0xff] %v166
    %315 = vst [vmem:[#allocation8 + $0x48] sm:$0xff] %v207
    %316 = vst [vmem:[#allocation8 + $0x50] sm:$0xff] %v248
    %317 = vst [vmem:[#allocation8 + $0x58] sm:$0xff] %v289
    %318 = vst [vmem:[#allocation8 + $0x60] sm:$0xff] %v169
    %319 = vst [vmem:[#allocation8 + $0x68] sm:$0xff] %v210
    %320 = vst [vmem:[#allocation8 + $0x70] sm:$0xff] %v251
    %321 = vst [vmem:[#allocation8 + $0x78] sm:$0xff] %v292
    %322 = vst [vmem:[#allocation8 + $0x80] sm:$0xff] %v172
    %323 = vst [vmem:[#allocation8 + $0x88] sm:$0xff] %v213
    %324 = vst [vmem:[#allocation8 + $0x90] sm:$0xff] %v254
    %325 = vst [vmem:[#allocation8 + $0x98] sm:$0xff] %v295
    %326 = vst [vmem:[#allocation8 + $0xa0] sm:$0xff] %v175
    %327 = vst [vmem:[#allocation8 + $0xa8] sm:$0xff] %v216
    %328 = vst [vmem:[#allocation8 + $0xb0] sm:$0xff] %v257
    %329 = vst [vmem:[#allocation8 + $0xb8] sm:$0xff] %v298
    %330 = vst [vmem:[#allocation8 + $0xc0] sm:$0xff] %v178
    %331 = vst [vmem:[#allocation8 + $0xc8] sm:$0xff] %v219
    %332 = vst [vmem:[#allocation8 + $0xd0] sm:$0xff] %v260
    %333 = vst [vmem:[#allocation8 + $0xd8] sm:$0xff] %v301
    %334 = vst [vmem:[#allocation8 + $0xe0] sm:$0xff] %v181
    %335 = vst [vmem:[#allocation8 + $0xe8] sm:$0xff] %v222
    %336 = vst [vmem:[#allocation8 + $0xf0] sm:$0xff] %v263
    %337 = vst [vmem:[#allocation8 + $0xf8] sm:$0xff] %v304
    // Predicated region
    $region26: #{tpu_custom_call.1} parent=1 // pred_check
      _
    $region27: #{tpu_custom_call.1} parent=1 // pred_check_branch
      %339 = sbr.rel (0) target = $region29
    $region28: #{tpu_custom_call.1} parent=1 // pred_region
      %341 = vsyncadd [#allocation4], 0
      %s342 = sshll.u32 [#allocation8], 4
      %s343 = int_to_ptr.vmem [resolvable:$true] %s342
      %s344 = sshll.u32 %s3, 4
      %s345 = int_to_ptr.hbm [resolvable:$true] %s344
      %350 = dma.vmem_to_hbm [thread:$0]  %s343, 4096, %s345, [#allocation4], 512, 512, 32
    $region29: #{tpu_custom_call.1} parent=1 // pred_fallthru
      _
    // Predicated region
    $region30: #{tpu_custom_call.1} parent=1 // pred_check
      _
    $region31: #{tpu_custom_call.1} parent=1 // pred_check_branch
      %352 = sbr.rel (0) target = $region33
    $region32: #{tpu_custom_call.1} parent=1 // pred_region
      %354 = dma.done [#allocation4], 4096
    $region33: #{tpu_custom_call.1} parent=1 // pred_fallthru
      _
    %355 = vsyncpa [#allocation3], 1
    %356 = vsyncpa [#allocation6], 1
    %357 = vsyncpa [#allocation4], 1

// kernel: tpu_custom_call.1
$region0: #{tpu_custom_call.1}
  #allocation0 [shape = 'u32[]', space=smem, size = 0x4, offset = 0x4, fixed_abs, tag = 'smem constant byte address 0x4 - core index']
  #allocation1 [shape = 'u32[72,128]{1,0:T(1,128)}', space=vmem, size = 0x9000, scoped, tag = 'internal scratch']
  %s0 = inlined_call_operand.hbm [shape: f32[8,8,128], index: 0, kind: input, shape index: {}]
  %s1 = inlined_call_operand.hbm [shape: f32[128,512], index: 1, kind: input, shape index: {}]
  %s2 = inlined_call_operand.hbm [shape: f32[1,512], index: 2, kind: input, shape index: {}]
  %s3 = inlined_call_operand.hbm [shape: f32[8,8,512], index: 3, kind: output, shape index: {}]
  %s4 = sld [smem:[#allocation0]]
  $region34: #{tpu_custom_call.1} parent=0
    _
  %s6 = ssub.s32 1, %s4
  %s7 = scalar_select 0, %s6, %s4
  $region1: #{tpu_custom_call.1} parent=0
    #allocation2 [shape = 'u8[32768]{0}', space=vmem, size = 0x8000, scoped, tag = 'input window, operand 0, single buffered']
    #allocation3 [shape = 's32[1]{0}', space=sflag, size = 0x4, scoped, tag = 'scoped memory for tpu_custom_call.1']
    #allocation4 [shape = 's32[1]{0}', space=sflag, size = 0x4, scoped, tag = 'scoped memory for tpu_custom_call.1']
    #allocation5 [shape = 'u8[262144]{0}', space=vmem, size = 0x40000, scoped, tag = 'input window, operand 1, single buffered']
    #allocation6 [shape = 's32[1]{0}', space=sflag, size = 0x4, scoped, tag = 'scoped memory for tpu_custom_call.1']
    #allocation7 [shape = 'u8[2048]{0}', space=vmem, size = 0x800, scoped, tag = 'input window, operand 2, single buffered']
    #allocation8 [shape = 'u8[131072]{0}', space=vmem, size = 0x20000, scoped, tag = 'output window, operand 0, single buffered']
    %8 = vsyncpa [#allocation3], 0
    %9 = vsyncpa [#allocation6], 0
    %10 = vsyncpa [#allocation4], 0
    // Predicated region
    $region2: #{tpu_custom_call.1} parent=1 // pred_check
      _
    $region3: #{tpu_custom_call.1} parent=1 // pred_check_branch
      %12 = sbr.rel (0) target = $region5
    $region4: #{tpu_custom_call.1} parent=1 // pred_region
      %14 = vsyncadd [#allocation3], 0
      %s15 = sshll.u32 %s0, 4
      %s16 = int_to_ptr.hbm [resolvable:$true] %s15
      %s17 = sshll.u32 [#allocation2], 4
      %s18 = int_to_ptr.vmem [resolvable:$true] %s17
      %23 = dma.hbm_to_vmem [thread:$0]  %s16, 1024, %s18, [#allocation3], 128, 128, 8
    $region5: #{tpu_custom_call.1} parent=1 // pred_fallthru
      _
    // Predicated region
    $region6: #{tpu_custom_call.1} parent=1 // pred_check
      _
    $region7: #{tpu_custom_call.1} parent=1 // pred_check_branch
      %25 = sbr.rel (0) target = $region9
    $region8: #{tpu_custom_call.1} parent=1 // pred_region
      %27 = vsyncadd [#allocation6], 0
      %s28 = sshll.u32 %s1, 4
      %s29 = int_to_ptr.hbm [resolvable:$true] %s28
      %s30 = sshll.u32 [#allocation5], 4
      %s31 = int_to_ptr.vmem [resolvable:$true] %s30
      %36 = dma.hbm_to_vmem [thread:$0]  %s29, 8192, %s31, [#allocation6], 512, 512, 32
    $region9: #{tpu_custom_call.1} parent=1 // pred_fallthru
      _
    // Predicated region
    $region10: #{tpu_custom_call.1} parent=1 // pred_check
      _
    $region11: #{tpu_custom_call.1} parent=1 // pred_check_branch
      %38 = sbr.rel (0) target = $region13
    $region12: #{tpu_custom_call.1} parent=1 // pred_region
      %40 = vsyncadd [#allocation6], 0
      %s42 = sshll.u32 %s2, 4
      %s43 = int_to_ptr.hbm [resolvable:$true] %s42
      %s44 = sshll.u32 [#allocation7], 4
      %s45 = int_to_ptr.vmem [resolvable:$true] %s44
      %47 = dma.hbm_to_vmem [thread:$0]  %s43, 64, %s45, [#allocation6]
    $region13: #{tpu_custom_call.1} parent=1 // pred_fallthru
      _
    // Predicated region
    $region14: #{tpu_custom_call.1} parent=1 // pred_check
      _
    $region15: #{tpu_custom_call.1} parent=1 // pred_check_branch
      %49 = sbr.rel (0) target = $region17
    $region16: #{tpu_custom_call.1} parent=1 // pred_region
      %51 = dma.done [#allocation3], 1024
    $region17: #{tpu_custom_call.1} parent=1 // pred_fallthru
      _
    // Predicated region
    $region18: #{tpu_custom_call.1} parent=1 // pred_check
      _
    $region19: #{tpu_custom_call.1} parent=1 // pred_check_branch
      %53 = sbr.rel (0) target = $region21
    $region20: #{tpu_custom_call.1} parent=1 // pred_region
      %55 = dma.done [#allocation6], 8192
    $region21: #{tpu_custom_call.1} parent=1 // pred_fallthru
      _
    // Predicated region
    $region22: #{tpu_custom_call.1} parent=1 // pred_check
      _
    $region23: #{tpu_custom_call.1} parent=1 // pred_check_branch
      %57 = sbr.rel (0) target = $region25
    $region24: #{tpu_custom_call.1} parent=1 // pred_region
      %59 = dma.done [#allocation6], 64
    $region25: #{tpu_custom_call.1} parent=1 // pred_fallthru
      _
    %v60 = vld [vmem:[#allocation2] sm:$0xff]
    %v61 = vld [vmem:[#allocation2 + $0x8] sm:$0xff]
    %v62 = vld [vmem:[#allocation2 + $0x10] sm:$0xff]
    %v63 = vld [vmem:[#allocation2 + $0x18] sm:$0xff]
    %v64 = vld [vmem:[#allocation2 + $0x20] sm:$0xff]
    %v65 = vld [vmem:[#allocation2 + $0x28] sm:$0xff]
    %v66 = vld [vmem:[#allocation2 + $0x30] sm:$0xff]
    %v67 = vld [vmem:[#allocation2 + $0x38] sm:$0xff]
    %v68 = vld [vmem:[#allocation5] sm:$0xff]
    %v69 = vld [vmem:[#allocation5 + $0x8] sm:$0xff]
    %v70 = vld [vmem:[#allocation5 + $0x10] sm:$0xff]
    %v71 = vld [vmem:[#allocation5 + $0x18] sm:$0xff]
    %v72 = vld [vmem:[#allocation5 + $0x20] sm:$0xff]
    %v73 = vld [vmem:[#allocation5 + $0x28] sm:$0xff]
    %v74 = vld [vmem:[#allocation5 + $0x30] sm:$0xff]
    %v75 = vld [vmem:[#allocation5 + $0x38] sm:$0xff]
    %v76 = vld [vmem:[#allocation5 + $0x40] sm:$0xff]
    %v77 = vld [vmem:[#allocation5 + $0x48] sm:$0xff]
    %v78 = vld [vmem:[#allocation5 + $0x50] sm:$0xff]
    %v79 = vld [vmem:[#allocation5 + $0x58] sm:$0xff]
    %v80 = vld [vmem:[#allocation5 + $0x60] sm:$0xff]
    %v81 = vld [vmem:[#allocation5 + $0x68] sm:$0xff]
    %v82 = vld [vmem:[#allocation5 + $0x70] sm:$0xff]
    %v83 = vld [vmem:[#allocation5 + $0x78] sm:$0xff]
    %v84 = vld [vmem:[#allocation5 + $0x80] sm:$0xff]
    %v85 = vld [vmem:[#allocation5 + $0x88] sm:$0xff]
    %v86 = vld [vmem:[#allocation5 + $0x90] sm:$0xff]
    %v87 = vld [vmem:[#allocation5 + $0x98] sm:$0xff]
    %v88 = vld [vmem:[#allocation5 + $0xa0] sm:$0xff]
    %v89 = vld [vmem:[#allocation5 + $0xa8] sm:$0xff]
    %v90 = vld [vmem:[#allocation5 + $0xb0] sm:$0xff]
    %v91 = vld [vmem:[#allocation5 + $0xb8] sm:$0xff]
    %v92 = vld [vmem:[#allocation5 + $0xc0] sm:$0xff]
    %v93 = vld [vmem:[#allocation5 + $0xc8] sm:$0xff]
    %v94 = vld [vmem:[#allocation5 + $0xd0] sm:$0xff]
    %v95 = vld [vmem:[#allocation5 + $0xd8] sm:$0xff]
    %v96 = vld [vmem:[#allocation5 + $0xe0] sm:$0xff]
    %v97 = vld [vmem:[#allocation5 + $0xe8] sm:$0xff]
    %v98 = vld [vmem:[#allocation5 + $0xf0] sm:$0xff]
    %v99 = vld [vmem:[#allocation5 + $0xf8] sm:$0xff]
    %v100 = vld [vmem:[#allocation5 + $0x100] sm:$0xff]
    %v101 = vld [vmem:[#allocation5 + $0x108] sm:$0xff]
    %v102 = vld [vmem:[#allocation5 + $0x110] sm:$0xff]
    %v103 = vld [vmem:[#allocation5 + $0x118] sm:$0xff]
    %v104 = vld [vmem:[#allocation5 + $0x120] sm:$0xff]
    %v105 = vld [vmem:[#allocation5 + $0x128] sm:$0xff]
    %v106 = vld [vmem:[#allocation5 + $0x130] sm:$0xff]
    %v107 = vld [vmem:[#allocation5 + $0x138] sm:$0xff]
    %v108 = vld [vmem:[#allocation5 + $0x140] sm:$0xff]
    %v109 = vld [vmem:[#allocation5 + $0x148] sm:$0xff]
    %v110 = vld [vmem:[#allocation5 + $0x150] sm:$0xff]
    %v111 = vld [vmem:[#allocation5 + $0x158] sm:$0xff]
    %v112 = vld [vmem:[#allocation5 + $0x160] sm:$0xff]
    %v113 = vld [vmem:[#allocation5 + $0x168] sm:$0xff]
    %v114 = vld [vmem:[#allocation5 + $0x170] sm:$0xff]
    %v115 = vld [vmem:[#allocation5 + $0x178] sm:$0xff]
    %v116 = vld [vmem:[#allocation5 + $0x180] sm:$0xff]
    %v117 = vld [vmem:[#allocation5 + $0x188] sm:$0xff]
    %v118 = vld [vmem:[#allocation5 + $0x190] sm:$0xff]
    %v119 = vld [vmem:[#allocation5 + $0x198] sm:$0xff]
    %v120 = vld [vmem:[#allocation5 + $0x1a0] sm:$0xff]
    %v121 = vld [vmem:[#allocation5 + $0x1a8] sm:$0xff]
    %v122 = vld [vmem:[#allocation5 + $0x1b0] sm:$0xff]
    %v123 = vld [vmem:[#allocation5 + $0x1b8] sm:$0xff]
    %v124 = vld [vmem:[#allocation5 + $0x1c0] sm:$0xff]
    %v125 = vld [vmem:[#allocation5 + $0x1c8] sm:$0xff]
    %v126 = vld [vmem:[#allocation5 + $0x1d0] sm:$0xff]
    %v127 = vld [vmem:[#allocation5 + $0x1d8] sm:$0xff]
    %v128 = vld [vmem:[#allocation5 + $0x1e0] sm:$0xff]
    %v129 = vld [vmem:[#allocation5 + $0x1e8] sm:$0xff]
    %v130 = vld [vmem:[#allocation5 + $0x1f0] sm:$0xff]
    %v131 = vld [vmem:[#allocation5 + $0x1f8] sm:$0xff]
    %v132 = vld [vmem:[#allocation7] sm:$0xf]
    %v134 = vperm.slane %v132, 0
    %v135 = vperm.slane %v132, 1
    %v136 = vperm.slane %v132, 2
    %v137 = vperm.slane %v132, 3
    %142 = vmatpush.msra.mxu0 %v128
    %143 = vmatpush.msra.mxu0 %v124
    %144 = vmatpush.msra.mxu0 %v120
    %145 = vmatpush.msra.mxu0 %v116
    %146 = vmatpush.msra.mxu0 %v112
    %147 = vmatpush.msra.mxu0 %v108
    %148 = vmatpush.msra.mxu0 %v104
    %149 = vmatpush.msra.mxu0 %v100
    %150 = vmatpush.msra.mxu0 %v96
    %151 = vmatpush.msra.mxu0 %v92
    %152 = vmatpush.msra.mxu0 %v88
    %153 = vmatpush.msra.mxu0 %v84
    %154 = vmatpush.msra.mxu0 %v80
    %155 = vmatpush.msra.mxu0 %v76
    %156 = vmatpush.msra.mxu0 %v72
    %157 = vmatpush.msra.mxu0 %v68
    %158 = vmatmul.f32.gmra.mxu0 %v60
    %v159 = vpop.f32.mrf.mxu0
    %v160 = vadd.f32 %v134, %v159
    %161 = vmatmul.f32.gmra.mxu0 %v61
    %v162 = vpop.f32.mrf.mxu0
    %v163 = vadd.f32 %v134, %v162
    %164 = vmatmul.f32.gmra.mxu0 %v62
    %v165 = vpop.f32.mrf.mxu0
    %v166 = vadd.f32 %v134, %v165
    %167 = vmatmul.f32.gmra.mxu0 %v63
    %v168 = vpop.f32.mrf.mxu0
    %v169 = vadd.f32 %v134, %v168
    %170 = vmatmul.f32.gmra.mxu0 %v64
    %v171 = vpop.f32.mrf.mxu0
    %v172 = vadd.f32 %v134, %v171
    %173 = vmatmul.f32.gmra.mxu0 %v65
    %v174 = vpop.f32.mrf.mxu0
    %v175 = vadd.f32 %v134, %v174
    %176 = vmatmul.f32.gmra.mxu0 %v66
    %v177 = vpop.f32.mrf.mxu0
    %v178 = vadd.f32 %v134, %v177
    %179 = vmatmul.f32.gmra.mxu0 %v67
    %v180 = vpop.f32.mrf.mxu0
    %v181 = vadd.f32 %v134, %v180
    %182 = vdwg.mxu0
    %183 = vmatpush.msra.mxu0 %v129
    %184 = vmatpush.msra.mxu0 %v125
    %185 = vmatpush.msra.mxu0 %v121
    %186 = vmatpush.msra.mxu0 %v117
    %187 = vmatpush.msra.mxu0 %v113
    %188 = vmatpush.msra.mxu0 %v109
    %189 = vmatpush.msra.mxu0 %v105
    %190 = vmatpush.msra.mxu0 %v101
    %191 = vmatpush.msra.mxu0 %v97
    %192 = vmatpush.msra.mxu0 %v93
    %193 = vmatpush.msra.mxu0 %v89
    %194 = vmatpush.msra.mxu0 %v85
    %195 = vmatpush.msra.mxu0 %v81
    %196 = vmatpush.msra.mxu0 %v77
    %197 = vmatpush.msra.mxu0 %v73
    %198 = vmatpush.msra.mxu0 %v69
    %199 = vmatmul.f32.gmra.mxu0 %v60
    %v200 = vpop.f32.mrf.mxu0
    %v201 = vadd.f32 %v135, %v200
    %202 = vmatmul.f32.gmra.mxu0 %v61
    %v203 = vpop.f32.mrf.mxu0
    %v204 = vadd.f32 %v135, %v203
    %205 = vmatmul.f32.gmra.mxu0 %v62
    %v206 = vpop.f32.mrf.mxu0
    %v207 = vadd.f32 %v135, %v206
    %208 = vmatmul.f32.gmra.mxu0 %v63
    %v209 = vpop.f32.mrf.mxu0
    %v210 = vadd.f32 %v135, %v209
    %211 = vmatmul.f32.gmra.mxu0 %v64
    %v212 = vpop.f32.mrf.mxu0
    %v213 = vadd.f32 %v135, %v212
    %214 = vmatmul.f32.gmra.mxu0 %v65
    %v215 = vpop.f32.mrf.mxu0
    %v216 = vadd.f32 %v135, %v215
    %217 = vmatmul.f32.gmra.mxu0 %v66
    %v218 = vpop.f32.mrf.mxu0
    %v219 = vadd.f32 %v135, %v218
    %220 = vmatmul.f32.gmra.mxu0 %v67
    %v221 = vpop.f32.mrf.mxu0
    %v222 = vadd.f32 %v135, %v221
    %223 = vdwg.mxu0
    %224 = vmatpush.msra.mxu0 %v130
    %225 = vmatpush.msra.mxu0 %v126
    %226 = vmatpush.msra.mxu0 %v122
    %227 = vmatpush.msra.mxu0 %v118
    %228 = vmatpush.msra.mxu0 %v114
    %229 = vmatpush.msra.mxu0 %v110
    %230 = vmatpush.msra.mxu0 %v106
    %231 = vmatpush.msra.mxu0 %v102
    %232 = vmatpush.msra.mxu0 %v98
    %233 = vmatpush.msra.mxu0 %v94
    %234 = vmatpush.msra.mxu0 %v90
    %235 = vmatpush.msra.mxu0 %v86
    %236 = vmatpush.msra.mxu0 %v82
    %237 = vmatpush.msra.mxu0 %v78
    %238 = vmatpush.msra.mxu0 %v74
    %239 = vmatpush.msra.mxu0 %v70
    %240 = vmatmul.f32.gmra.mxu0 %v60
    %v241 = vpop.f32.mrf.mxu0
    %v242 = vadd.f32 %v136, %v241
    %243 = vmatmul.f32.gmra.mxu0 %v61
    %v244 = vpop.f32.mrf.mxu0
    %v245 = vadd.f32 %v136, %v244
    %246 = vmatmul.f32.gmra.mxu0 %v62
    %v247 = vpop.f32.mrf.mxu0
    %v248 = vadd.f32 %v136, %v247
    %249 = vmatmul.f32.gmra.mxu0 %v63
    %v250 = vpop.f32.mrf.mxu0
    %v251 = vadd.f32 %v136, %v250
    %252 = vmatmul.f32.gmra.mxu0 %v64
    %v253 = vpop.f32.mrf.mxu0
    %v254 = vadd.f32 %v136, %v253
    %255 = vmatmul.f32.gmra.mxu0 %v65
    %v256 = vpop.f32.mrf.mxu0
    %v257 = vadd.f32 %v136, %v256
    %258 = vmatmul.f32.gmra.mxu0 %v66
    %v259 = vpop.f32.mrf.mxu0
    %v260 = vadd.f32 %v136, %v259
    %261 = vmatmul.f32.gmra.mxu0 %v67
    %v262 = vpop.f32.mrf.mxu0
    %v263 = vadd.f32 %v136, %v262
    %264 = vdwg.mxu0
    %265 = vmatpush.msra.mxu0 %v131
    %266 = vmatpush.msra.mxu0 %v127
    %267 = vmatpush.msra.mxu0 %v123
    %268 = vmatpush.msra.mxu0 %v119
    %269 = vmatpush.msra.mxu0 %v115
    %270 = vmatpush.msra.mxu0 %v111
    %271 = vmatpush.msra.mxu0 %v107
    %272 = vmatpush.msra.mxu0 %v103
    %273 = vmatpush.msra.mxu0 %v99
    %274 = vmatpush.msra.mxu0 %v95
    %275 = vmatpush.msra.mxu0 %v91
    %276 = vmatpush.msra.mxu0 %v87
    %277 = vmatpush.msra.mxu0 %v83
    %278 = vmatpush.msra.mxu0 %v79
    %279 = vmatpush.msra.mxu0 %v75
    %280 = vmatpush.msra.mxu0 %v71
    %281 = vmatmul.f32.gmra.mxu0 %v60
    %v282 = vpop.f32.mrf.mxu0
    %v283 = vadd.f32 %v137, %v282
    %284 = vmatmul.f32.gmra.mxu0 %v61
    %v285 = vpop.f32.mrf.mxu0
    %v286 = vadd.f32 %v137, %v285
    %287 = vmatmul.f32.gmra.mxu0 %v62
    %v288 = vpop.f32.mrf.mxu0
    %v289 = vadd.f32 %v137, %v288
    %290 = vmatmul.f32.gmra.mxu0 %v63
    %v291 = vpop.f32.mrf.mxu0
    %v292 = vadd.f32 %v137, %v291
    %293 = vmatmul.f32.gmra.mxu0 %v64
    %v294 = vpop.f32.mrf.mxu0
    %v295 = vadd.f32 %v137, %v294
    %296 = vmatmul.f32.gmra.mxu0 %v65
    %v297 = vpop.f32.mrf.mxu0
    %v298 = vadd.f32 %v137, %v297
    %299 = vmatmul.f32.gmra.mxu0 %v66
    %v300 = vpop.f32.mrf.mxu0
    %v301 = vadd.f32 %v137, %v300
    %302 = vmatmul.f32.gmra.mxu0 %v67
    %v303 = vpop.f32.mrf.mxu0
    %v304 = vadd.f32 %v137, %v303
    %305 = vdwg.mxu0
    %306 = vst [vmem:[#allocation8] sm:$0xff] %v160
    %307 = vst [vmem:[#allocation8 + $0x8] sm:$0xff] %v201
    %308 = vst [vmem:[#allocation8 + $0x10] sm:$0xff] %v242
    %309 = vst [vmem:[#allocation8 + $0x18] sm:$0xff] %v283
    %310 = vst [vmem:[#allocation8 + $0x20] sm:$0xff] %v163
    %311 = vst [vmem:[#allocation8 + $0x28] sm:$0xff] %v204
    %312 = vst [vmem:[#allocation8 + $0x30] sm:$0xff] %v245
    %313 = vst [vmem:[#allocation8 + $0x38] sm:$0xff] %v286
    %314 = vst [vmem:[#allocation8 + $0x40] sm:$0xff] %v166
    %315 = vst [vmem:[#allocation8 + $0x48] sm:$0xff] %v207
    %316 = vst [vmem:[#allocation8 + $0x50] sm:$0xff] %v248
    %317 = vst [vmem:[#allocation8 + $0x58] sm:$0xff] %v289
    %318 = vst [vmem:[#allocation8 + $0x60] sm:$0xff] %v169
    %319 = vst [vmem:[#allocation8 + $0x68] sm:$0xff] %v210
    %320 = vst [vmem:[#allocation8 + $0x70] sm:$0xff] %v251
    %321 = vst [vmem:[#allocation8 + $0x78] sm:$0xff] %v292
    %322 = vst [vmem:[#allocation8 + $0x80] sm:$0xff] %v172
    %323 = vst [vmem:[#allocation8 + $0x88] sm:$0xff] %v213
    %324 = vst [vmem:[#allocation8 + $0x90] sm:$0xff] %v254
    %325 = vst [vmem:[#allocation8 + $0x98] sm:$0xff] %v295
    %326 = vst [vmem:[#allocation8 + $0xa0] sm:$0xff] %v175
    %327 = vst [vmem:[#allocation8 + $0xa8] sm:$0xff] %v216
    %328 = vst [vmem:[#allocation8 + $0xb0] sm:$0xff] %v257
    %329 = vst [vmem:[#allocation8 + $0xb8] sm:$0xff] %v298
    %330 = vst [vmem:[#allocation8 + $0xc0] sm:$0xff] %v178
    %331 = vst [vmem:[#allocation8 + $0xc8] sm:$0xff] %v219
    %332 = vst [vmem:[#allocation8 + $0xd0] sm:$0xff] %v260
    %333 = vst [vmem:[#allocation8 + $0xd8] sm:$0xff] %v301
    %334 = vst [vmem:[#allocation8 + $0xe0] sm:$0xff] %v181
    %335 = vst [vmem:[#allocation8 + $0xe8] sm:$0xff] %v222
    %336 = vst [vmem:[#allocation8 + $0xf0] sm:$0xff] %v263
    %337 = vst [vmem:[#allocation8 + $0xf8] sm:$0xff] %v304
    // Predicated region
    $region26: #{tpu_custom_call.1} parent=1 // pred_check
      _
    $region27: #{tpu_custom_call.1} parent=1 // pred_check_branch
      %339 = sbr.rel (0) target = $region29
    $region28: #{tpu_custom_call.1} parent=1 // pred_region
      %341 = vsyncadd [#allocation4], 0
      %s342 = sshll.u32 [#allocation8], 4
      %s343 = int_to_ptr.vmem [resolvable:$true] %s342
      %s344 = sshll.u32 %s3, 4
      %s345 = int_to_ptr.hbm [resolvable:$true] %s344
      %350 = dma.vmem_to_hbm [thread:$0]  %s343, 4096, %s345, [#allocation4], 512, 512, 32
    $region29: #{tpu_custom_call.1} parent=1 // pred_fallthru
      _
    // Predicated region
    $region30: #{tpu_custom_call.1} parent=1 // pred_check
      _
    $region31: #{tpu_custom_call.1} parent=1 // pred_check_branch
      %352 = sbr.rel (0) target = $region33
    $region32: #{tpu_custom_call.1} parent=1 // pred_region
      %354 = dma.done [#allocation4], 4096
    $region33: #{tpu_custom_call.1} parent=1 // pred_fallthru
      _
    %355 = vsyncpa [#allocation3], 1
    %356 = vsyncpa [#allocation6], 1
    %357 = vsyncpa [#allocation4], 1

</llo_original>
